<compile_context>
chip_gen: v7x
topology: tpu7x:2x2x1
jax: 0.10.0
libtpu: 0.0.40
codegen_flags: <defaults>
</compile_context>

<pallas_src>
import functools
import math

import jax
import jax.numpy as jnp
from jax.experimental import pallas as pl
from jax.experimental.pallas import tpu as pltpu

_MiB = 1024 * 1024


def _scaler_kernel(scale_ref, x_ref, o_ref, *, compute_f32: bool):
    """One tile of out = x * scale. scale_ref is a (1,) f32 scalar in SMEM."""
    s = scale_ref[0]
    x = x_ref[...]
    if compute_f32:
        # Exact f32-promotion semantics: multiply in f32, round once to x.dtype.
        o_ref[...] = (x.astype(jnp.float32) * s).astype(o_ref.dtype)
    else:
        # dtype-native multiply (bf16/int8 VPU path on v6e/v7x): cast the scalar
        # once; the per-element inner loop is pure load/mul/store.
        o_ref[...] = x * s.astype(x_ref.dtype)


def _default_tile_and_vmem_budget():
    """Generation-aware (tile_bytes, vmem_limit_bytes).

    Per-block VMEM footprint is 2 double buffers x (in + out) = 4 x tile_bytes.
    On v7x each TensorCore of the sharded grid holds its own buffers inside its
    64 MiB, so the budget is sized per-TC, never toward "physical VMEM".
    """
    try:
        info = pltpu.get_tpu_info()
        vmem = int(getattr(info, "vmem_capacity_bytes", 128 * _MiB))
    except Exception:  # non-TPU / interpret / older runtime: be conservative
        vmem = 64 * _MiB
    # Keep 4 x tile_bytes within half of (per-core) VMEM, capped at 6 MiB tiles:
    # 24 MiB of buffers fits an explicit 32 MiB scoped limit on v5e/v6e and
    # v7x's 64 MiB/TC alike, and 6 MiB blocks amortize the ~0.35 us per-step
    # overhead down to ~3-4% at HBM roofline.
    tile_bytes = min(6 * _MiB, max(1 * _MiB, (vmem // 2) // 4))
    vmem_limit = min(48 * _MiB, max(32 * _MiB, 4 * tile_bytes + 4 * _MiB))
    return tile_bytes, vmem_limit


def scaler_forward(x: jax.Array, scale, *, max_tile_bytes: int | None = None,
                   compute_f32: bool | None = None, donate_input: bool = False,
                   allow_input_fusion: bool = False) -> jax.Array:
    """Applies out = x * scale with the multiply done in a Pallas TPU kernel.

    Args:
      x: activation of any shape (e.g. (N, C, T) features in MQ meta_archs).
      scale: scalar (learnable f32 nn.Parameter in the PyTorch module).
      max_tile_bytes: per-block byte budget; default is generation-aware.
      compute_f32: True -> multiply in f32 then round (PyTorch f32-promotion
        parity). Default: True for 32-bit inputs (free), False for bf16/int8
        so the v6e/v7x VPU runs dtype-native without converts.
      donate_input: alias x's buffer to the output. ONLY set if the caller does
        not use x afterwards; otherwise XLA inserts a defensive full copy.
      allow_input_fusion: let XLA fuse x's producer into the kernel input.
    """
    orig_shape = x.shape
    orig_dtype = x.dtype
    total = math.prod(orig_shape) if orig_shape else 1
    itemsize = jnp.dtype(orig_dtype).itemsize

    scale_f32 = jnp.asarray(scale, dtype=jnp.float32)

    # Widest lane-dense column count that divides the element count: the common
    # (N, C, T) feature-map case becomes a zero-copy reshape (no pad / slice).
    cols = None
    for c in (2048, 1024, 512, 256, 128):
        if total % c == 0:
            cols = c
            break

    if cols is None or total == 0:
        # Misaligned element count: a padded Pallas path would cost ~3x the HBM
        # traffic of this op (pad write + kernel r/w + slice r/w), so let XLA's
        # fused elementwise multiply handle it — it is already at roofline.
        return (x.astype(jnp.float32) * scale_f32).astype(orig_dtype)

    if compute_f32 is None:
        compute_f32 = (itemsize == 4)

    if max_tile_bytes is None:
        max_tile_bytes, vmem_limit_bytes = _default_tile_and_vmem_budget()
    else:
        vmem_limit_bytes = min(48 * _MiB, max(32 * _MiB, 4 * max_tile_bytes + 4 * _MiB))

    x2d = x.reshape(total // cols, cols)  # zero-copy row-major view
    rows = x2d.shape[0]

    # Sublane packing: f32 -> 8 rows, bf16 -> 16, int8/fp8 -> 32.
    row_align = max(8, 32 // itemsize)

    rows_per_tile = max_tile_bytes // (cols * itemsize)
    rows_per_tile = max(row_align, (rows_per_tile // row_align) * row_align)

    # Megacore: for inputs worth splitting, make sure the grid has >= 2
    # (preferably 4) blocks so both v7x TensorCores drive their own HBM stream
    # under dimension_semantics=("parallel",).
    total_bytes = rows * cols * itemsize
    if total_bytes >= 1 * _MiB and rows >= 2 * row_align:
        desired_blocks = min(4, rows // row_align)
        cap = -(-rows // desired_blocks)            # ceil(rows / desired_blocks)
        cap = -(-cap // row_align) * row_align      # round up to sublane packing
        rows_per_tile = min(rows_per_tile, cap)

    tile_rows = min(rows, rows_per_tile)
    grid = (pl.cdiv(rows, tile_rows),)  # ragged last block handled by Pallas masking

    kernel = functools.partial(_scaler_kernel, compute_f32=compute_f32)

    compiler_kwargs = dict(
        dimension_semantics=("parallel",),        # megacore sharding (v7x: 2 TCs)
        vmem_limit_bytes=int(vmem_limit_bytes),   # explicit: v5e default is only 16 MiB
    )
    if allow_input_fusion:
        compiler_kwargs["allow_input_fusion"] = [False, True]  # scalar: no, slab: yes

    pallas_kwargs = {}
    if donate_input:
        pallas_kwargs["input_output_aliases"] = {1: 0}  # footprint win only if truly donated

    out2d = pl.pallas_call(
        kernel,
        out_shape=jax.ShapeDtypeStruct((rows, cols), orig_dtype),
        grid_spec=pl.GridSpec(
            grid=grid,
            in_specs=[
                pl.BlockSpec(memory_space=pltpu.SMEM),              # (1,) f32 `scale`
                pl.BlockSpec((tile_rows, cols), lambda i: (i, 0)),  # input slab tile
            ],
            out_specs=pl.BlockSpec((tile_rows, cols), lambda i: (i, 0)),
        ),
        compiler_params=pltpu.CompilerParams(**compiler_kwargs),
        **pallas_kwargs,
    )(scale_f32.reshape((1,)), x2d)

    return out2d.reshape(orig_shape)


if __name__ == "__main__":
    key = jax.random.PRNGKey(0)

    # (batch, channels, seq) temporal feature map, as used by MQ meta_archs.
    x = jax.random.normal(key, (2, 4, 16), dtype=jnp.float32)
    scale_param = jnp.float32(1.0)  # nn.Parameter(torch.tensor(1.0)) init
    out = jax.block_until_ready(scaler_forward(x, scale_param))
    assert out.shape == x.shape and out.dtype == x.dtype
    assert jnp.allclose(out, x * scale_param, atol=1e-6), "mismatch vs reference"

    # Non-unit scale on a lane-dense fast-path shape (free reshape, single block).
    x2 = jax.random.normal(jax.random.PRNGKey(1), (2, 32, 512), dtype=jnp.float32)
    out2 = jax.block_until_ready(scaler_forward(x2, jnp.float32(2.5)))
    assert jnp.allclose(out2, x2 * 2.5, atol=1e-6), "mismatch vs reference (2.5)"

    # >= 1 MiB input: megacore split kicks in (4-block grid); also exercise donation.
    x3 = jax.random.normal(jax.random.PRNGKey(2), (2, 128, 1024), dtype=jnp.float32)
    out3 = jax.block_until_ready(scaler_forward(x3, jnp.float32(-0.75), donate_input=True))
    assert jnp.allclose(out3, x3 * -0.75, atol=1e-6), "mismatch vs reference (megacore)"

    # Ragged grid (rows not a multiple of tile_rows), forced with a tiny budget.
    x4 = jax.random.normal(jax.random.PRNGKey(3), (1, 36, 128), dtype=jnp.float32)
    out4 = jax.block_until_ready(
        scaler_forward(x4, jnp.float32(0.3), max_tile_bytes=512 * 4 * 8))
    assert jnp.allclose(out4, x4 * 0.3, atol=1e-6), "mismatch vs reference (ragged)"

    # Misaligned element count: fused-XLA fallback (no pad/slice HBM passes).
    x5 = jax.random.normal(jax.random.PRNGKey(4), (3, 5, 7), dtype=jnp.float32)
    out5 = jax.block_until_ready(scaler_forward(x5, jnp.float32(0.3)))
    assert jnp.allclose(out5, x5 * 0.3, atol=1e-6), "mismatch vs reference (misaligned)"

    # bf16 activations: dtype-native multiply (default for sub-32-bit inputs).
    x6 = jax.random.normal(jax.random.PRNGKey(5), (2, 8, 128), dtype=jnp.bfloat16)
    out6 = jax.block_until_ready(scaler_forward(x6, jnp.float32(0.5)))
    ref6 = (x6.astype(jnp.float32) * 0.5).astype(jnp.bfloat16)
    assert out6.dtype == jnp.bfloat16
    assert jnp.allclose(out6.astype(jnp.float32), ref6.astype(jnp.float32), atol=1e-2)

    # bf16 with exact f32-promotion parity (flagged path).
    out7 = jax.block_until_ready(scaler_forward(x6, jnp.float32(0.5), compute_f32=True))
    assert jnp.allclose(out7.astype(jnp.float32), ref6.astype(jnp.float32), atol=1e-2)

    print("KERNEL_OK")
</pallas_src>

<mosaic_0001>
module attributes {stable_mosaic.version = 11 : i64} {
  func.func @_scaler_kernel(%arg0: i32, %arg1: memref<1xf32, #tpu.memory_space<smem>>, %arg2: memref<1x128xf32, #tpu.memory_space<vmem>>, %arg3: memref<1x128xf32, #tpu.memory_space<vmem>>) attributes {dimension_semantics = [#tpu.dimension_semantics<parallel>], iteration_bounds = array<i64: 1>, scalar_prefetch = 0 : i64, scratch_operands = 0 : i64, tpu.core_type = #tpu.core_type<tc>, window_params = [{transform_indices = @transform_0, window_bounds = array<i64: 1>}, {transform_indices = @transform_1, window_bounds = array<i64: 1, 128>}, {transform_indices = @transform_2, window_bounds = array<i64: 1, 128>}]} {
    %c0 = arith.constant 0 : index
    %0 = memref.load %arg1[%c0] : memref<1xf32, #tpu.memory_space<smem>>
    %c0_0 = arith.constant 0 : index
    %c0_1 = arith.constant 0 : index
    %1 = vector.load %arg2[%c0_0, %c0_1] : memref<1x128xf32, #tpu.memory_space<vmem>>, vector<1x128xf32>
    %2 = vector.broadcast %0 : f32 to vector<1x128xf32>
    %3 = arith.mulf %1, %2 : vector<1x128xf32>
    %c0_2 = arith.constant 0 : index
    %c0_3 = arith.constant 0 : index
    %4 = vector.load %arg3[%c0_2, %c0_3] : memref<1x128xf32, #tpu.memory_space<vmem>>, vector<1x128xf32>
    tpu.vector_store %arg3[%c0_2, %c0_3], %3 {strides = array<i32>} : memref<1x128xf32, #tpu.memory_space<vmem>>, vector<1x128xf32>,
    return
  }
  func.func @transform_0(%arg0: i32) -> i32 {
    %c0_i32 = arith.constant 0 : i32
    %c0_i32_0 = arith.constant 0 : i32
    return %c0_i32 : i32
  }
  func.func @transform_1(%arg0: i32) -> (i32, i32) {
    %c0_i32 = arith.constant 0 : i32
    %c0_i32_0 = arith.constant 0 : i32
    return %arg0, %c0_i32 : i32, i32
  }
  func.func @transform_2(%arg0: i32) -> (i32, i32) {
    %c0_i32 = arith.constant 0 : i32
    %c0_i32_0 = arith.constant 0 : i32
    return %arg0, %c0_i32 : i32, i32
  }
}

</mosaic_0001>

<llo_original>
// kernel: tpu_custom_call.1
$region0: #{tpu_custom_call.1}
  #allocation0 [shape = 'u32[]', space=smem, size = 0x4, offset = 0x4, fixed_abs, tag = 'smem constant byte address 0x4 - core index']
  #allocation1 [shape = 'u32[144,128]{1,0:T(1,128)}', space=vmem, size = 0x12000, scoped, tag = 'internal scratch']
  #allocation2 [shape = 'f32[1]{0:T(128)S(6)}', space=smem, size = 0x200, scoped, tag = 'scoped memory for tpu_custom_call.1']
  %s0 = inlined_call_operand.<no memory space> [shape: f32[1], index: 0, kind: input, shape index: {}]
  %s1 = inlined_call_operand.vmem [shape: f32[1,128], index: 1, kind: input, shape index: {}]
  %s2 = inlined_call_operand.hbm [shape: f32[1,128], index: 2, kind: output, shape index: {}]
  %s3 = sld [smem:[#allocation0]]
  $region18: #{tpu_custom_call.1} parent=0
    _
  %s5 = ssub.s32 1, %s3
  %s6 = scalar_select 0, %s5, %s3
  %7 = sst [smem:[#allocation2]] %s0
  $region1: #{tpu_custom_call.1} parent=0
    #allocation3 [shape = 'u8[512]{0}', space=vmem, size = 0x400, scoped, tag = 'output window, operand 0, single buffered']
    #allocation4 [shape = 's32[1]{0}', space=sflag, size = 0x4, scoped, tag = 'scoped memory for tpu_custom_call.1']
    %8 = vsyncpa [#allocation4], 0
    // Predicated region
    $region2: #{tpu_custom_call.1} parent=1 // pred_check
      _
    $region3: #{tpu_custom_call.1} parent=1 // pred_check_branch
      %10 = sbr.rel (0) target = $region5
    $region4: #{tpu_custom_call.1} parent=1 // pred_region
      _
    $region5: #{tpu_custom_call.1} parent=1 // pred_fallthru
      _
    // Predicated region
    $region6: #{tpu_custom_call.1} parent=1 // pred_check
      _
    $region7: #{tpu_custom_call.1} parent=1 // pred_check_branch
      %12 = sbr.rel (0) target = $region9
    $region8: #{tpu_custom_call.1} parent=1 // pred_region
      _
    $region9: #{tpu_custom_call.1} parent=1 // pred_fallthru
      _
    %s13 = sld [smem:[#allocation2]]
    %v14 = vld [vmem:[%s1] sm:$0x1]
    %v15 = vstv %s13
    %v16 = vmul.f32 %v14, %v15
    %17 = vst [vmem:[#allocation3] sm:$0x1] %v16
    // Predicated region
    $region10: #{tpu_custom_call.1} parent=1 // pred_check
      _
    $region11: #{tpu_custom_call.1} parent=1 // pred_check_branch
      %19 = sbr.rel (0) target = $region13
    $region12: #{tpu_custom_call.1} parent=1 // pred_region
      %s21 = ssub.s32 16, 16
      %22 = vsyncadd [#allocation4], %s21
      %s24 = sshll.u32 [#allocation3], 4
      %s25 = int_to_ptr.vmem [resolvable:$true] %s24
      %27 = dma.vmem_to_hbm [thread:$0]  %s25, 16, %s2, [#allocation4]
    $region13: #{tpu_custom_call.1} parent=1 // pred_fallthru
      _
    // Predicated region
    $region14: #{tpu_custom_call.1} parent=1 // pred_check
      _
    $region15: #{tpu_custom_call.1} parent=1 // pred_check_branch
      %29 = sbr.rel (0) target = $region17
    $region16: #{tpu_custom_call.1} parent=1 // pred_region
      %30 = dma.done [#allocation4], 16
    $region17: #{tpu_custom_call.1} parent=1 // pred_fallthru
      _
    %31 = vsyncpa [#allocation4], 1

</llo_original>
